<compile_context>
chip_gen: v5e
topology: v5e:2x2
jax: 0.10.0
libtpu: 0.0.40
codegen_flags: <defaults>
</compile_context>

<pallas_src>
import math

import jax
import jax.numpy as jnp
import numpy as np
from jax.experimental import pallas as pl
from jax.experimental.pallas import tpu as pltpu

LANE = 128


def _round_up(x, m):
    return (x + m - 1) // m * m


def _pick_tile_m(M, target=1024):
    """Largest tile <= target that divides M and is a multiple of 8 (or == M).

    Prefers a grid of >= 2 blocks so pipelining / megacore sharding are active.
    """
    target = min(target, M)
    if M >= 16 and (M // 2) >= 8:
        target = min(target, M // 2)
    for t in range(target, 0, -1):
        if M % t == 0 and (t % 8 == 0 or t == M):
            return t
    return M


# --------------------------------------------------------------------------
# Pallas kernel: pointwise conv (matmul) + bias + SiLU
# x: (tm, K) bf16, w: (K, Cp) bf16, bias: (1, Cp) f32, out: (tm, Cp) f32
# --------------------------------------------------------------------------
def _pw_conv_bias_silu_kernel(x_ref, w_ref, b_ref, o_ref):
    acc = jnp.dot(x_ref[...], w_ref[...], preferred_element_type=jnp.float32)
    y = acc + b_ref[...]                              # folded-BN bias (f32)
    o_ref[...] = (y * (1.0 / (1.0 + jnp.exp(-y)))).astype(o_ref.dtype)  # SiLU in f32


def pointwise_conv_bias_silu(x2, w, bias, *, target_tm=1024):
    """x2: (M, K) bf16, w: (K, Cp) bf16 (BN scale folded in), bias: (Cp,) f32."""
    M, K = x2.shape
    Cp = w.shape[1]
    tm = _pick_tile_m(M, target_tm)
    grid = (M // tm,)

    cost = pl.CostEstimate(
        flops=2 * M * K * Cp,
        transcendentals=M * Cp,                       # exp in the SiLU epilogue
        bytes_accessed=(M * K * 2 + K * Cp * 2 + Cp * 4 + M * Cp * 4),
    )

    return pl.pallas_call(
        _pw_conv_bias_silu_kernel,
        out_shape=jax.ShapeDtypeStruct((M, Cp), jnp.float32),
        grid=grid,
        in_specs=[
            pl.BlockSpec((tm, K), lambda i: (i, 0)),
            pl.BlockSpec((K, Cp), lambda i: (0, 0)),
            pl.BlockSpec((1, Cp), lambda i: (0, 0)),
        ],
        out_specs=pl.BlockSpec((tm, Cp), lambda i: (i, 0)),
        compiler_params=pltpu.CompilerParams(dimension_semantics=("parallel",)),
        cost_estimate=cost,
    )(x2, w, bias.reshape(1, Cp).astype(jnp.float32))


# --------------------------------------------------------------------------
# Parameter init (deterministic, synthetic).  Eval-mode BN running stats.
# --------------------------------------------------------------------------
def init_focus_params(key, c1, c2, eps=1e-5):
    kw, kg, kb, km, kv = jax.random.split(key, 5)
    cin = 4 * c1
    w = jax.random.normal(kw, (cin, c2), jnp.float32) / math.sqrt(cin)   # 1x1 conv
    gamma = 1.0 + 0.1 * jax.random.normal(kg, (c2,), jnp.float32)
    beta = 0.1 * jax.random.normal(kb, (c2,), jnp.float32)
    mean = 0.1 * jax.random.normal(km, (c2,), jnp.float32)
    var = jnp.abs(jax.random.normal(kv, (c2,), jnp.float32)) + 0.5
    scale = gamma / jnp.sqrt(var + eps)
    bias = beta - mean * scale
    return {"w": w, "scale": scale, "bias": bias}


# --------------------------------------------------------------------------
# Focus forward (Pallas path).  Input/output NCHW like PyTorch.
# --------------------------------------------------------------------------
def focus_forward(x_nchw, params):
    N, C1, H, W = x_nchw.shape
    assert H % 2 == 0 and W % 2 == 0
    Hh, Wh = H // 2, W // 2
    K = 4 * C1

    # space-to-depth, matching torch.cat ordering exactly (channel dim = 1)
    p0 = x_nchw[:, :, 0::2, 0::2]
    p1 = x_nchw[:, :, 1::2, 0::2]
    p2 = x_nchw[:, :, 0::2, 1::2]
    p3 = x_nchw[:, :, 1::2, 1::2]
    xs = jnp.concatenate([p0, p1, p2, p3], axis=1)            # (N, 4*C1, Hh, Wh)

    # NCHW -> NHWC -> (M, K), bf16 (XLA fuses this into one permutation pass)
    x2 = jnp.transpose(xs, (0, 2, 3, 1)).reshape(N * Hh * Wh, K).astype(jnp.bfloat16)

    # fold BN scale into weight columns; pad Cout to a lane-dense multiple of 128
    w = params["w"] * params["scale"][None, :]
    bias = params["bias"]
    C2 = w.shape[1]
    C2p = _round_up(C2, LANE)
    if C2p != C2:
        w = jnp.pad(w, ((0, 0), (0, C2p - C2)))
        bias = jnp.pad(bias, (0, C2p - C2))
    w_bf16 = w.astype(jnp.bfloat16)

    out2 = pointwise_conv_bias_silu(x2, w_bf16, bias)         # (M, C2p) f32
    out = out2.reshape(N, Hh, Wh, C2p)[..., :C2]
    return jnp.transpose(out, (0, 3, 1, 2))                   # (N, C2, Hh, Wh)


# --------------------------------------------------------------------------
# Pure-JAX reference (same bf16 quantization of inputs/weights, exact math)
# --------------------------------------------------------------------------
def focus_reference(x_nchw, params):
    p0 = x_nchw[:, :, 0::2, 0::2]
    p1 = x_nchw[:, :, 1::2, 0::2]
    p2 = x_nchw[:, :, 0::2, 1::2]
    p3 = x_nchw[:, :, 1::2, 1::2]
    xs = jnp.concatenate([p0, p1, p2, p3], axis=1)            # (N, 4*C1, Hh, Wh)

    w = params["w"] * params["scale"][None, :]
    xs_q = xs.astype(jnp.bfloat16).astype(jnp.float32)        # match kernel's bf16 inputs
    w_q = w.astype(jnp.bfloat16).astype(jnp.float32)
    y = jnp.einsum("nchw,co->nohw", xs_q, w_q) + params["bias"][None, :, None, None]
    return y * jax.nn.sigmoid(y)                              # (N, C2, Hh, Wh)


if __name__ == "__main__":
    key = jax.random.PRNGKey(0)
    k_x, k_p = jax.random.split(key)

    N, C1, H, W = 2, 4, 16, 16
    C2 = 8

    x = jax.random.normal(k_x, (N, C1, H, W), jnp.float32)    # NCHW like PyTorch
    params = init_focus_params(k_p, C1, C2)

    fwd = jax.jit(focus_forward)
    out = jax.block_until_ready(fwd(x, params))
    ref = jax.block_until_ready(focus_reference(x, params))

    assert out.shape == (N, C2, H // 2, W // 2)
    assert np.allclose(np.asarray(out), np.asarray(ref), rtol=1e-3, atol=1e-3), (
        float(np.max(np.abs(np.asarray(out) - np.asarray(ref)))))

    print("KERNEL_OK")
</pallas_src>

<mosaic_0001>
module attributes {stable_mosaic.version = 11 : i64} {
  func.func @_pw_conv_bias_silu_kernel(%arg0: i32, %arg1: memref<64x16xbf16, #tpu.memory_space<vmem>>, %arg2: memref<16x128xbf16, #tpu.memory_space<vmem>>, %arg3: memref<1x128xf32, #tpu.memory_space<vmem>>, %arg4: memref<64x128xf32, #tpu.memory_space<vmem>>) attributes {dimension_semantics = [#tpu.dimension_semantics<parallel>], iteration_bounds = array<i64: 2>, scalar_prefetch = 0 : i64, scratch_operands = 0 : i64, tpu.core_type = #tpu.core_type<tc>, window_params = [{transform_indices = @transform_0, window_bounds = array<i64: 64, 16>}, {pipeline_mode = #tpu.pipeline_mode<synchronous>, transform_indices = @transform_1, window_bounds = array<i64: 16, 128>}, {pipeline_mode = #tpu.pipeline_mode<synchronous>, transform_indices = @transform_2, window_bounds = array<i64: 1, 128>}, {transform_indices = @transform_3, window_bounds = array<i64: 64, 128>}]} {
    %c0 = arith.constant 0 : index
    %c0_0 = arith.constant 0 : index
    %0 = vector.load %arg1[%c0, %c0_0] : memref<64x16xbf16, #tpu.memory_space<vmem>>, vector<64x16xbf16>
    %c0_1 = arith.constant 0 : index
    %c0_2 = arith.constant 0 : index
    %1 = vector.load %arg2[%c0_1, %c0_2] : memref<16x128xbf16, #tpu.memory_space<vmem>>, vector<16x128xbf16>
    %cst = arith.constant dense<0.000000e+00> : vector<64x128xf32>
    %2 = tpu.matmul %0, %1, %cst {dimension_numbers = #tpu.dot_dimension_numbers<[1], [0], [0], [1], [0, 0, 1, 1], [], []>} : vector<64x16xbf16>, vector<16x128xbf16>, vector<64x128xf32> -> vector<64x128xf32>
    %c0_3 = arith.constant 0 : index
    %c0_4 = arith.constant 0 : index
    %3 = vector.load %arg3[%c0_3, %c0_4] : memref<1x128xf32, #tpu.memory_space<vmem>>, vector<1x128xf32>
    %4 = vector.broadcast %3 : vector<1x128xf32> to vector<64x128xf32>
    %5 = arith.addf %2, %4 : vector<64x128xf32>
    %cst_5 = arith.constant 0.000000e+00 : f32
    %6 = vector.broadcast %cst_5 : f32 to vector<64x128xf32>
    %7 = arith.subf %6, %5 : vector<64x128xf32>
    %8 = math.exp %7 : vector<64x128xf32>
    %cst_6 = arith.constant 1.000000e+00 : f32
    %9 = vector.broadcast %cst_6 : f32 to vector<64x128xf32>
    %10 = arith.addf %9, %8 : vector<64x128xf32>
    %cst_7 = arith.constant 1.000000e+00 : f32
    %11 = vector.broadcast %cst_7 : f32 to vector<64x128xf32>
    %12 = arith.divf %11, %10 : vector<64x128xf32>
    %13 = arith.mulf %5, %12 : vector<64x128xf32>
    %c0_8 = arith.constant 0 : index
    %c0_9 = arith.constant 0 : index
    %14 = vector.load %arg4[%c0_8, %c0_9] : memref<64x128xf32, #tpu.memory_space<vmem>>, vector<64x128xf32>
    tpu.vector_store %arg4[%c0_8, %c0_9], %13 {strides = array<i32>} : memref<64x128xf32, #tpu.memory_space<vmem>>, vector<64x128xf32>,
    return
  }
  func.func @transform_0(%arg0: i32) -> (i32, i32) {
    %c0_i32 = arith.constant 0 : i32
    %c0_i32_0 = arith.constant 0 : i32
    return %arg0, %c0_i32 : i32, i32
  }
  func.func @transform_1(%arg0: i32) -> (i32, i32) {
    %c0_i32 = arith.constant 0 : i32
    %c0_i32_0 = arith.constant 0 : i32
    %c0_i32_1 = arith.constant 0 : i32
    return %c0_i32, %c0_i32_0 : i32, i32
  }
  func.func @transform_2(%arg0: i32) -> (i32, i32) {
    %c0_i32 = arith.constant 0 : i32
    %c0_i32_0 = arith.constant 0 : i32
    %c0_i32_1 = arith.constant 0 : i32
    return %c0_i32, %c0_i32_0 : i32, i32
  }
  func.func @transform_3(%arg0: i32) -> (i32, i32) {
    %c0_i32 = arith.constant 0 : i32
    %c0_i32_0 = arith.constant 0 : i32
    return %arg0, %c0_i32 : i32, i32
  }
}

</mosaic_0001>

<llo_original>
// kernel: focus_forward.1
$region0: #{focus_forward.1}
  #allocation0 [shape = 'u32[]', space=smem, size = 0x4, offset = 0x4, fixed_abs, tag = 'smem constant byte address 0x4 - core index']
  #allocation1 [shape = 'u32[72,128]{1,0:T(1,128)}', space=vmem, size = 0x9000, scoped, tag = 'internal scratch']
  %s0 = inlined_call_operand.vmem [shape: bf16[128,16], index: 0, kind: input, shape index: {}]
  %s1 = inlined_call_operand.vmem [shape: bf16[16,128], index: 1, kind: input, shape index: {}]
  %s2 = inlined_call_operand.vmem [shape: f32[1,128], index: 2, kind: input, shape index: {}]
  %s3 = inlined_call_operand.vmem [shape: f32[128,128], index: 3, kind: output, shape index: {}]
  %s4 = sld [smem:[#allocation0]]
  $region45: #{focus_forward.1} parent=0
    _
  %s6 = ssub.s32 1, %s4
  %s7 = scalar_select 0, %s6, %s4
  loop: start=0, step=1, limit=4
  $region2: #{focus_forward.1} parent=0 // loop_pre_header
    _
  $region3: #{focus_forward.1} parent=0 // loop_header
    %s9 = sphi 0, %s13
    %p10 = scmp.ge.s32.totalorder %s9, 4
    %s19 = sphi 0, %s21
    %s22 = sphi 0, %s19
    %s23 = sphi 0, %s22
    %s39 = sphi 0, %s23
    %s43 = sphi 0, %s43
    %s45 = sphi 0, %s43
    %s46 = sphi 0, %s45
    %s60 = sphi 0, %s46
    %s64 = sphi 0, %s64
    %s66 = sphi 0, %s64
    %s67 = sphi 0, %s66
    %s81 = sphi 0, %s67
    %s87 = sphi 0, %s89
    %s90 = sphi 0, %s87
    %s91 = sphi 0, %s90
    %s107 = sphi 0, %s91
  $region4: #{focus_forward.1} parent=0 // loop_header_branch
    %12 = sbr.rel (%p10) target = $region8
  $region5: #{focus_forward.1} parent=0 // loop_body
    %s14 = ssub.s32 %s9, 1
    %s15 = ssub.s32 %s9, 2
    %s16 = sadd.s32 %s9, 1
    %s17 = ssub.s32 %s9, %s16
    %p18 = scmp.eq.s32.totalorder %s17, 0
    %s20 = sadd.s32 %s19, 1
    %s21 = scalar_select %p18, %s19, %s20
    %p24 = pneg %p18
    %p25 = scmp.eq.s32.totalorder %s9, 1
    %p26 = por %p24, %p25
    %p27 = scmp.ne.s32.totalorder %s19, %s22
    %p28 = scmp.eq.s32.totalorder %s9, 0
    %p29 = por %p27, %p28
    %p30 = scmp.ne.s32.totalorder %s19, %s22
    %p31 = scmp.eq.s32.totalorder %s14, 1
    %p32 = por %p30, %p31
    %p33 = scmp.ne.s32.totalorder %s22, %s23
    %p34 = scmp.eq.s32.totalorder %s14, 0
    %p35 = por %p33, %p34
    %p36 = scmp.ne.s32.totalorder %s22, %s23
    %p37 = scmp.eq.s32.totalorder %s15, 1
    %p38 = por %p36, %p37
    %p40 = scmp.ne.s32.totalorder %s23, %s39
    %p41 = scmp.eq.s32.totalorder %s15, 0
    %p42 = por %p40, %p41
    %s44 = sadd.s32 %s43, 1
    %p47 = scmp.eq.s32.totalorder %s9, 1
    %p48 = scmp.ne.s32.totalorder %s43, %s45
    %p49 = scmp.eq.s32.totalorder %s9, 0
    %p50 = por %p48, %p49
    %p51 = scmp.ne.s32.totalorder %s43, %s45
    %p52 = scmp.eq.s32.totalorder %s14, 1
    %p53 = por %p51, %p52
    %p54 = scmp.ne.s32.totalorder %s45, %s46
    %p55 = scmp.eq.s32.totalorder %s14, 0
    %p56 = por %p54, %p55
    %p57 = scmp.ne.s32.totalorder %s45, %s46
    %p58 = scmp.eq.s32.totalorder %s15, 1
    %p59 = por %p57, %p58
    %p61 = scmp.ne.s32.totalorder %s46, %s60
    %p62 = scmp.eq.s32.totalorder %s15, 0
    %p63 = por %p61, %p62
    %s65 = sadd.s32 %s64, 1
    %p68 = scmp.eq.s32.totalorder %s9, 1
    %p69 = scmp.ne.s32.totalorder %s64, %s66
    %p70 = scmp.eq.s32.totalorder %s9, 0
    %p71 = por %p69, %p70
    %p72 = scmp.ne.s32.totalorder %s64, %s66
    %p73 = scmp.eq.s32.totalorder %s14, 1
    %p74 = por %p72, %p73
    %p75 = scmp.ne.s32.totalorder %s66, %s67
    %p76 = scmp.eq.s32.totalorder %s14, 0
    %p77 = por %p75, %p76
    %p78 = scmp.ne.s32.totalorder %s66, %s67
    %p79 = scmp.eq.s32.totalorder %s15, 1
    %p80 = por %p78, %p79
    %p82 = scmp.ne.s32.totalorder %s67, %s81
    %p83 = scmp.eq.s32.totalorder %s15, 0
    %p84 = por %p82, %p83
    %s85 = ssub.s32 %s9, %s16
    %p86 = scmp.eq.s32.totalorder %s85, 0
    %s88 = sadd.s32 %s87, 1
    %s89 = scalar_select %p86, %s87, %s88
    %p92 = pneg %p86
    %p93 = scmp.eq.s32.totalorder %s9, 1
    %p94 = por %p92, %p93
    %p95 = scmp.ne.s32.totalorder %s87, %s90
    %p96 = scmp.eq.s32.totalorder %s9, 0
    %p97 = por %p95, %p96
    %p98 = scmp.ne.s32.totalorder %s87, %s90
    %p99 = scmp.eq.s32.totalorder %s14, 1
    %p100 = por %p98, %p99
    %p101 = scmp.ne.s32.totalorder %s90, %s91
    %p102 = scmp.eq.s32.totalorder %s14, 0
    %p103 = por %p101, %p102
    %p104 = scmp.ne.s32.totalorder %s90, %s91
    %p105 = scmp.eq.s32.totalorder %s15, 1
    %p106 = por %p104, %p105
    %p108 = scmp.ne.s32.totalorder %s91, %s107
    %p109 = scmp.eq.s32.totalorder %s15, 0
    %p110 = por %p108, %p109
    %p111 = scmp.le.s32.totalorder 1, %s9
    %p112 = scmp.lt.s32.totalorder %s9, 3
    %p113 = pnand %p111, %p112
    %p114 = pneg %p113
    // Predicated region
    $region9: #{focus_forward.1} parent=5 // pred_check
      _
    $region10: #{focus_forward.1} parent=5 // pred_check_branch
      %116 = sbr.rel (%p113) target = $region12
    $region11: #{focus_forward.1} parent=5 // pred_region
      %s117 = ssub.s32 %s9, 1
      // Predicated region
      $region13: #{focus_forward.1} parent=11 // pred_check
        %p118 = pneg %p56
      $region14: #{focus_forward.1} parent=11 // pred_check_branch
        %120 = sbr.rel (%p118) target = $region16
      $region15: #{focus_forward.1} parent=11 // pred_region
        _
      $region16: #{focus_forward.1} parent=11 // pred_fallthru
        _
      // Predicated region
      $region17: #{focus_forward.1} parent=11 // pred_check
        %p121 = pneg %p77
      $region18: #{focus_forward.1} parent=11 // pred_check_branch
        %123 = sbr.rel (%p121) target = $region20
      $region19: #{focus_forward.1} parent=11 // pred_region
        _
      $region20: #{focus_forward.1} parent=11 // pred_fallthru
        _
    $region12: #{focus_forward.1} parent=5 // pred_fallthru
      _
    %p124 = scmp.lt.s32.totalorder %s9, 2
    // Predicated region
    $region21: #{focus_forward.1} parent=5 // pred_check
      %p125 = pneg %p124
    $region22: #{focus_forward.1} parent=5 // pred_check_branch
      %127 = sbr.rel (%p125) target = $region24
    $region23: #{focus_forward.1} parent=5 // pred_region
      // Predicated region
      $region25: #{focus_forward.1} parent=23 // pred_check
        %p128 = pneg %p29
      $region26: #{focus_forward.1} parent=23 // pred_check_branch
        %130 = sbr.rel (%p128) target = $region28
      $region27: #{focus_forward.1} parent=23 // pred_region
        %s131 = smul.u32 8, %s9
        %p132 = scmp.lt.s32.totalorder %s131, 15
        %s133 = scalar_select %p132, %s131, 15
        %s134 = smul.addr %s133, 4
        %s135 = scalar_lea.vmem %s0, %s134
        %s136 = smul.u32 8, %s9
      $region28: #{focus_forward.1} parent=23 // pred_fallthru
        _
    $region24: #{focus_forward.1} parent=5 // pred_fallthru
      _
    %p137 = scmp.le.s32.totalorder 1, %s9
    %p138 = scmp.lt.s32.totalorder %s9, 3
    %p139 = pnand %p137, %p138
    %p140 = pneg %p139
    // Predicated region
    $region29: #{focus_forward.1} parent=5 // pred_check
      _
    $region30: #{focus_forward.1} parent=5 // pred_check_branch
      %142 = sbr.rel (%p139) target = $region32
    $region31: #{focus_forward.1} parent=5 // pred_region
      %s143 = ssub.s32 %s9, 1
      %s144 = smul.u32 8, %s14
      %p145 = scmp.lt.s32.totalorder %s144, 15
      %s146 = scalar_select %p145, %s144, 15
      %s147 = smul.addr %s146, 4
      %s148 = scalar_lea.vmem %s0, %s147
      %p149 = pneg %p35
      %p150 = pneg %p32
      %p151 = pneg %p56
      %p152 = pneg %p53
      %p153 = pneg %p77
      %p154 = pneg %p74
      %p155 = pneg %p103
      %p156 = pneg %p100
      %s157 = smul.u32 8, %s14
      %p158 = scmp.lt.s32.totalorder %s157, 15
      %s159 = scalar_select %p158, %s157, 15
      %s160 = smul.addr %s159, 8
      %s161 = scalar_lea.vmem %s3, %s160
      %s162 = smul.u32 8, %s14
      %p163 = scmp.lt.s32.totalorder %s162, 15
      %s164 = scalar_select %p163, %s162, 15
      %s165 = smul.addr %s164, 4
      %s166 = scalar_lea.vmem %s0, %s165
      %s167 = smul.u32 8, %s14
      %s168 = smul.u32 8, %s14
      %p169 = scmp.lt.s32.totalorder %s168, 15
      %s170 = scalar_select %p169, %s168, 15
      %s171 = smul.addr %s170, 8
      %s172 = scalar_lea.vmem %s3, %s171
      %s173 = smul.u32 8, %s14
      %v175 = vld [vmem:[%s166] sm:$0xf]
      %v176 = vld [vmem:[%s166 + $0x4] sm:$0xf]
      %v177 = vld [vmem:[%s166 + $0x8] sm:$0xf]
      %v178 = vld [vmem:[%s166 + $0xc] sm:$0xf]
      %v179 = vld [vmem:[%s166 + $0x10] sm:$0xf]
      %v180 = vld [vmem:[%s166 + $0x14] sm:$0xf]
      %v181 = vld [vmem:[%s166 + $0x18] sm:$0xf]
      %v182 = vld [vmem:[%s166 + $0x1c] sm:$0xf]
      %v183 = vld [vmem:[%s1] sm:$0xf]
      %v184 = vld [vmem:[%s1 + $0x4] sm:$0xf]
      %v185 = vld [vmem:[%s2] sm:$0x1]
      %v187 = vperm.slane %v185, 0
      %v197 = vunpack.c.l.b16 %v175
      %v198 = vunpack.c.l.b16 %v176
      %v199 = vunpack.c.l.b16 %v177
      %v200 = vunpack.c.l.b16 %v178
      %v201 = vunpack.c.l.b16 %v179
      %v202 = vunpack.c.l.b16 %v180
      %v203 = vunpack.c.l.b16 %v181
      %v204 = vunpack.c.l.b16 %v182
      %v205 = vpack.c.b16 %v198, %v197
      %v206 = vpack.c.b16 %v200, %v199
      %v207 = vpack.c.b16 %v202, %v201
      %v208 = vpack.c.b16 %v204, %v203
      %v211 = vunpack.c.l.b16 %v183
      %v212 = vunpack.c.l.b16 %v184
      %v213 = vpack.c.b16 %v212, %v211
      %vm215 = vcmask 130048
      %v217 = vsel %vm215, %v205, 0
      %v220 = vsel %vm215, %v206, 0
      %v223 = vsel %vm215, %v207, 0
      %v226 = vsel %vm215, %v208, 0
      %228 = vmatpush.bf16.msra.mxu0 0
      %229 = vmatpush.bf16.msra.mxu0 0
      %230 = vmatpush.bf16.msra.mxu0 0
      %231 = vmatpush.bf16.msra.mxu0 0
      %232 = vmatpush.bf16.msra.mxu0 0
      %233 = vmatpush.bf16.msra.mxu0 0
      %234 = vmatpush.bf16.msra.mxu0 0
      %235 = vmatpush.bf16.msra.mxu0 %v213
      %236 = vmatmul.bf16.gmra.mxu0 %v217
      %v237 = vpop.f32.mrf.mxu0
      %v238 = vadd.f32 %v187, %v237
      %v239 = vpop.f32.mrf.mxu0
      %v240 = vadd.f32 %v187, %v239
      %241 = vmatmul.bf16.gmra.mxu0 %v220
      %v242 = vpop.f32.mrf.mxu0
      %v243 = vadd.f32 %v187, %v242
      %v244 = vpop.f32.mrf.mxu0
      %v245 = vadd.f32 %v187, %v244
      %246 = vmatmul.bf16.gmra.mxu0 %v223
      %v247 = vpop.f32.mrf.mxu0
      %v248 = vadd.f32 %v187, %v247
      %v249 = vpop.f32.mrf.mxu0
      %v250 = vadd.f32 %v187, %v249
      %251 = vmatmul.bf16.gmra.mxu0 %v226
      %v252 = vpop.f32.mrf.mxu0
      %v253 = vadd.f32 %v187, %v252
      %v254 = vpop.f32.mrf.mxu0
      %v255 = vadd.f32 %v187, %v254
      %256 = vdwg.mxu0
      %v257 = vsub.f32 0.0, %v238
      %v258 = vsub.f32 0.0, %v240
      %v259 = vsub.f32 0.0, %v243
      %v260 = vsub.f32 0.0, %v245
      %v261 = vsub.f32 0.0, %v248
      %v262 = vsub.f32 0.0, %v250
      %v263 = vsub.f32 0.0, %v253
      %v264 = vsub.f32 0.0, %v255
      %v265 = vmul.f32 %v257, 1.442695
      %v266 = vpow.pop %v265
      %v267 = vmul.f32 %v258, 1.442695
      %v268 = vpow.pop %v267
      %v269 = vmul.f32 %v259, 1.442695
      %v270 = vpow.pop %v269
      %v271 = vmul.f32 %v260, 1.442695
      %v272 = vpow.pop %v271
      %v273 = vmul.f32 %v261, 1.442695
      %v274 = vpow.pop %v273
      %v275 = vmul.f32 %v262, 1.442695
      %v276 = vpow.pop %v275
      %v277 = vmul.f32 %v263, 1.442695
      %v278 = vpow.pop %v277
      %v279 = vmul.f32 %v264, 1.442695
      %v280 = vpow.pop %v279
      %v281 = vadd.f32 %v266, 1.0
      %v282 = vadd.f32 %v268, 1.0
      %v283 = vadd.f32 %v270, 1.0
      %v284 = vadd.f32 %v272, 1.0
      %v285 = vadd.f32 %v274, 1.0
      %v286 = vadd.f32 %v276, 1.0
      %v287 = vadd.f32 %v278, 1.0
      %v288 = vadd.f32 %v280, 1.0
      %v289 = vrcp.pop %v281
      %v290 = vmul.f32 %v281, %v289
      %v291 = vsub.f32 1.0, %v290
      %v292 = vmul.f32 %v289, %v291
      %v293 = vadd.f32 %v289, %v292
      %vm294 = vweird.f32 %v281
      %vm295 = vweird.f32 %v289
      %vm296 = vmor %vm294, %vm295
      %v297 = vsel %vm296, %v289, %v293
      %v298 = vand.u32 2147483647, %v281
      %vm299 = vcmp.eq.f32.partialorder %v298, 8.507059e+37
      %v300 = vand.u32 %v281, 2147483648
      %v301 = vor.u32 1.1754944e-38, %v300
      %v302 = vsel %vm299, %v301, %v297
      %v303 = vmul.f32 1.0, %v302
      %v304 = vrcp.pop %v282
      %v305 = vmul.f32 %v282, %v304
      %v306 = vsub.f32 1.0, %v305
      %v307 = vmul.f32 %v304, %v306
      %v308 = vadd.f32 %v304, %v307
      %vm309 = vweird.f32 %v282
      %vm310 = vweird.f32 %v304
      %vm311 = vmor %vm309, %vm310
      %v312 = vsel %vm311, %v304, %v308
      %v313 = vand.u32 2147483647, %v282
      %vm314 = vcmp.eq.f32.partialorder %v313, 8.507059e+37
      %v315 = vand.u32 %v282, 2147483648
      %v316 = vor.u32 1.1754944e-38, %v315
      %v317 = vsel %vm314, %v316, %v312
      %v318 = vmul.f32 1.0, %v317
      %v319 = vrcp.pop %v283
      %v320 = vmul.f32 %v283, %v319
      %v321 = vsub.f32 1.0, %v320
      %v322 = vmul.f32 %v319, %v321
      %v323 = vadd.f32 %v319, %v322
      %vm324 = vweird.f32 %v283
      %vm325 = vweird.f32 %v319
      %vm326 = vmor %vm324, %vm325
      %v327 = vsel %vm326, %v319, %v323
      %v328 = vand.u32 2147483647, %v283
      %vm329 = vcmp.eq.f32.partialorder %v328, 8.507059e+37
      %v330 = vand.u32 %v283, 2147483648
      %v331 = vor.u32 1.1754944e-38, %v330
      %v332 = vsel %vm329, %v331, %v327
      %v333 = vmul.f32 1.0, %v332
      %v334 = vrcp.pop %v284
      %v335 = vmul.f32 %v284, %v334
      %v336 = vsub.f32 1.0, %v335
      %v337 = vmul.f32 %v334, %v336
      %v338 = vadd.f32 %v334, %v337
      %vm339 = vweird.f32 %v284
      %vm340 = vweird.f32 %v334
      %vm341 = vmor %vm339, %vm340
      %v342 = vsel %vm341, %v334, %v338
      %v343 = vand.u32 2147483647, %v284
      %vm344 = vcmp.eq.f32.partialorder %v343, 8.507059e+37
      %v345 = vand.u32 %v284, 2147483648
      %v346 = vor.u32 1.1754944e-38, %v345
      %v347 = vsel %vm344, %v346, %v342
      %v348 = vmul.f32 1.0, %v347
      %v349 = vrcp.pop %v285
      %v350 = vmul.f32 %v285, %v349
      %v351 = vsub.f32 1.0, %v350
      %v352 = vmul.f32 %v349, %v351
      %v353 = vadd.f32 %v349, %v352
      %vm354 = vweird.f32 %v285
      %vm355 = vweird.f32 %v349
      %vm356 = vmor %vm354, %vm355
      %v357 = vsel %vm356, %v349, %v353
      %v358 = vand.u32 2147483647, %v285
      %vm359 = vcmp.eq.f32.partialorder %v358, 8.507059e+37
      %v360 = vand.u32 %v285, 2147483648
      %v361 = vor.u32 1.1754944e-38, %v360
      %v362 = vsel %vm359, %v361, %v357
      %v363 = vmul.f32 1.0, %v362
      %v364 = vrcp.pop %v286
      %v365 = vmul.f32 %v286, %v364
      %v366 = vsub.f32 1.0, %v365
      %v367 = vmul.f32 %v364, %v366
      %v368 = vadd.f32 %v364, %v367
      %vm369 = vweird.f32 %v286
      %vm370 = vweird.f32 %v364
      %vm371 = vmor %vm369, %vm370
      %v372 = vsel %vm371, %v364, %v368
      %v373 = vand.u32 2147483647, %v286
      %vm374 = vcmp.eq.f32.partialorder %v373, 8.507059e+37
      %v375 = vand.u32 %v286, 2147483648
      %v376 = vor.u32 1.1754944e-38, %v375
      %v377 = vsel %vm374, %v376, %v372
      %v378 = vmul.f32 1.0, %v377
      %v379 = vrcp.pop %v287
      %v380 = vmul.f32 %v287, %v379
      %v381 = vsub.f32 1.0, %v380
      %v382 = vmul.f32 %v379, %v381
      %v383 = vadd.f32 %v379, %v382
      %vm384 = vweird.f32 %v287
      %vm385 = vweird.f32 %v379
      %vm386 = vmor %vm384, %vm385
      %v387 = vsel %vm386, %v379, %v383
      %v388 = vand.u32 2147483647, %v287
      %vm389 = vcmp.eq.f32.partialorder %v388, 8.507059e+37
      %v390 = vand.u32 %v287, 2147483648
      %v391 = vor.u32 1.1754944e-38, %v390
      %v392 = vsel %vm389, %v391, %v387
      %v393 = vmul.f32 1.0, %v392
      %v394 = vrcp.pop %v288
      %v395 = vmul.f32 %v288, %v394
      %v396 = vsub.f32 1.0, %v395
      %v397 = vmul.f32 %v394, %v396
      %v398 = vadd.f32 %v394, %v397
      %vm399 = vweird.f32 %v288
      %vm400 = vweird.f32 %v394
      %vm401 = vmor %vm399, %vm400
      %v402 = vsel %vm401, %v394, %v398
      %v403 = vand.u32 2147483647, %v288
      %vm404 = vcmp.eq.f32.partialorder %v403, 8.507059e+37
      %v405 = vand.u32 %v288, 2147483648
      %v406 = vor.u32 1.1754944e-38, %v405
      %v407 = vsel %vm404, %v406, %v402
      %v408 = vmul.f32 1.0, %v407
      %v409 = vmul.f32 %v238, %v303
      %v410 = vmul.f32 %v240, %v318
      %v411 = vmul.f32 %v243, %v333
      %v412 = vmul.f32 %v245, %v348
      %v413 = vmul.f32 %v248, %v363
      %v414 = vmul.f32 %v250, %v378
      %v415 = vmul.f32 %v253, %v393
      %v416 = vmul.f32 %v255, %v408
      %417 = vst [vmem:[%s172] sm:$0xff] %v409
      %418 = vst [vmem:[%s172 + $0x8] sm:$0xff] %v410
      %419 = vst [vmem:[%s172 + $0x10] sm:$0xff] %v411
      %420 = vst [vmem:[%s172 + $0x18] sm:$0xff] %v412
      %421 = vst [vmem:[%s172 + $0x20] sm:$0xff] %v413
      %422 = vst [vmem:[%s172 + $0x28] sm:$0xff] %v414
      %423 = vst [vmem:[%s172 + $0x30] sm:$0xff] %v415
      %424 = vst [vmem:[%s172 + $0x38] sm:$0xff] %v416
      %s425 = smul.u32 8, %s14
      %p426 = scmp.lt.s32.totalorder %s425, 15
      %s427 = scalar_select %p426, %s425, 15
      %s428 = smul.addr %s427, 8
      %s429 = scalar_lea.vmem %s3, %s428
      // Predicated region
      $region33: #{focus_forward.1} parent=31 // pred_check
        %p430 = pneg %p100
      $region34: #{focus_forward.1} parent=31 // pred_check_branch
        %432 = sbr.rel (%p430) target = $region36
      $region35: #{focus_forward.1} parent=31 // pred_region
        %s433 = smul.u32 8, %s14
      $region36: #{focus_forward.1} parent=31 // pred_fallthru
        _
    $region32: #{focus_forward.1} parent=5 // pred_fallthru
      _
    %p434 = scmp.le.s32.totalorder 2, %s9
    // Predicated region
    $region37: #{focus_forward.1} parent=5 // pred_check
      %p435 = pneg %p434
    $region38: #{focus_forward.1} parent=5 // pred_check_branch
      %437 = sbr.rel (%p435) target = $region40
    $region39: #{focus_forward.1} parent=5 // pred_region
      %s438 = ssub.s32 %s9, 2
      // Predicated region
      $region41: #{focus_forward.1} parent=39 // pred_check
        %p439 = pneg %p106
      $region42: #{focus_forward.1} parent=39 // pred_check_branch
        %441 = sbr.rel (%p439) target = $region44
      $region43: #{focus_forward.1} parent=39 // pred_region
        %s442 = smul.u32 8, %s15
        %p443 = scmp.lt.s32.totalorder %s442, 15
        %s444 = scalar_select %p443, %s442, 15
        %s445 = smul.addr %s444, 8
        %s446 = scalar_lea.vmem %s3, %s445
      $region44: #{focus_forward.1} parent=39 // pred_fallthru
        _
    $region40: #{focus_forward.1} parent=5 // pred_fallthru
      _
  $region6: #{focus_forward.1} parent=0 // loop_footer
    %s13 = sadd.s32 1, %s9
  $region7: #{focus_forward.1} parent=0 // loop_footer_branch
    %8 = sbr.rel target = $region3
  $region8: #{focus_forward.1} parent=0 // loop_exit
    _

</llo_original>
